<compile_context>
chip_gen: v5e
topology: v5e:2x2
jax: 0.10.0
libtpu: 0.0.40
codegen_flags: <defaults>
</compile_context>

<pallas_src>
import functools

import jax
import jax.numpy as jnp
from jax import lax
from jax.experimental import pallas as pl
from jax.experimental.pallas import tpu as pltpu


def _proj_mlp_kernel(*refs, eps, relu_flags):
    """Fused projection-MLP forward.

    refs layout:
      refs[0]                 : x        (N, K0p)        bf16
      refs[1 + 2*i]           : W_i^T    (K_ip, Out_ip)  bf16 (pre-transposed, padded)
      refs[2 + 2*i]           : [gamma; beta]_i  (2, Out_ip) f32 (padded with zeros)
      refs[1 + 2*nl]          : output   (N, Out_last_p)
    """
    nl = len(relu_flags)
    x_ref = refs[0]
    o_ref = refs[1 + 2 * nl]

    h = x_ref[...]  # bf16 activations for the MXU
    for i, relu in enumerate(relu_flags):
        w = refs[1 + 2 * i][...]          # (K, Out) bf16
        p = refs[2 + 2 * i][...]          # (2, Out) f32: [gamma, beta]
        gamma = p[0:1, :]
        beta = p[1:2, :]

        # MXU matmul: bf16 x bf16 -> f32 accumulate. NN layout, no transpose.
        y = jnp.dot(h, w, preferred_element_type=jnp.float32)   # (N, Out) f32

        # Training-mode BatchNorm1d over the batch axis (biased variance),
        # single-pass statistics. Linear bias omitted: exactly cancelled by the
        # batch-mean subtraction.
        inv_n = 1.0 / y.shape[0]
        mean = jnp.sum(y, axis=0, keepdims=True) * inv_n          # (1, Out)
        mean_sq = jnp.sum(y * y, axis=0, keepdims=True) * inv_n   # (1, Out)
        var = jnp.maximum(mean_sq - mean * mean, 0.0)
        scale = gamma * lax.rsqrt(var + eps)                      # rsqrt on EUP
        shift = beta - mean * scale                               # (1, Out) row vec
        out = y * scale + shift                                   # 2 full-tile ops

        if relu:
            out = jnp.maximum(out, 0.0)

        if i == nl - 1:
            o_ref[...] = out.astype(o_ref.dtype)
        else:
            h = out.astype(jnp.bfloat16)       # next layer's MXU input in bf16


def _round_up_128(v):
    return ((v + 127) // 128) * 128


def projection_mlp_forward(x, params, num_layers=3, eps=1e-5):
    """Forward pass of projection_MLP.

    params: dict with keys layer{1,2,3} -> (W, b, gamma, beta), W in PyTorch
    (out_features, in_features) layout. `b` is accepted but unused in the kernel
    (exactly cancelled by batch-stat BN; see header comment).
    """
    if num_layers == 3:
        layer_names = ("layer1", "layer2", "layer3")
        relu_flags = (True, True, False)
    elif num_layers == 2:
        layer_names = ("layer1", "layer3")
        relu_flags = (True, False)
    else:
        raise Exception

    x = jnp.asarray(x)
    n_batch, in_dim = x.shape
    out_dtype = x.dtype

    # Feature dims along the chain; pad each to a lane multiple (128) so every
    # matmul tile / store is lane-dense. Batch is NOT padded (it would change
    # the BatchNorm batch statistics).
    dims = [in_dim] + [params[name][0].shape[0] for name in layer_names]
    dims_p = [_round_up_128(d) for d in dims]

    x_p = jnp.pad(x, ((0, 0), (0, dims_p[0] - in_dim))).astype(jnp.bfloat16)

    flat_inputs = [x_p]
    for li, name in enumerate(layer_names):
        w, _b, g, be = params[name]
        k, out = int(w.shape[1]), int(w.shape[0])
        kp, outp = dims_p[li], dims_p[li + 1]
        w_t = jnp.asarray(w).T.astype(jnp.bfloat16)               # (K, Out)
        w_t = jnp.pad(w_t, ((0, kp - k), (0, outp - out)))        # zero pad
        p = jnp.stack([jnp.asarray(g), jnp.asarray(be)], axis=0).astype(jnp.float32)
        p = jnp.pad(p, ((0, 0), (0, outp - out)))                 # gamma/beta pad = 0
        flat_inputs += [w_t, p]

    out_dim = dims[-1]
    out_dim_p = dims_p[-1]
    out_shape = jax.ShapeDtypeStruct((n_batch, out_dim_p), out_dtype)

    # Scoped-VMEM budget: all operands + output + f32/bf16 working tiles per layer.
    est = n_batch * out_dim_p * jnp.dtype(out_dtype).itemsize
    for a in flat_inputs:
        est += a.nbytes
    for dp in dims_p[1:]:
        est += 3 * n_batch * dp * 4    # y / out f32 tiles + bf16 next-h slack
    vmem_limit = min(max(32 * 1024 * 1024, int(1.5 * est) + (2 << 20)),
                     128 * 1024 * 1024)

    kernel = functools.partial(_proj_mlp_kernel, eps=eps, relu_flags=relu_flags)
    vmem_spec = pl.BlockSpec(memory_space=pltpu.MemorySpace.VMEM)

    out = pl.pallas_call(
        kernel,
        out_shape=out_shape,
        in_specs=[vmem_spec] * len(flat_inputs),
        out_specs=vmem_spec,
        compiler_params=pltpu.CompilerParams(vmem_limit_bytes=vmem_limit),
    )(*flat_inputs)

    if out_dim_p != out_dim:
        out = out[:, :out_dim]
    return out


def _init_params(key, in_dim, hidden_dim, out_dim):
    """Deterministic synthetic parameter init (not a checkpoint load)."""
    ks = jax.random.split(key, 12)

    def linear(kw, kb, fan_in, fan_out):
        bound = 1.0 / jnp.sqrt(fan_in)
        w = jax.random.uniform(kw, (fan_out, fan_in), jnp.float32, -bound, bound)
        b = jax.random.uniform(kb, (fan_out,), jnp.float32, -bound, bound)
        return w, b

    def bn(kg, kb, dim):
        gamma = 1.0 + 0.1 * jax.random.normal(kg, (dim,), jnp.float32)
        beta = 0.1 * jax.random.normal(kb, (dim,), jnp.float32)
        return gamma, beta

    w1, b1 = linear(ks[0], ks[1], in_dim, hidden_dim)
    g1, be1 = bn(ks[2], ks[3], hidden_dim)
    w2, b2 = linear(ks[4], ks[5], hidden_dim, hidden_dim)
    g2, be2 = bn(ks[6], ks[7], hidden_dim)
    w3, b3 = linear(ks[8], ks[9], hidden_dim, out_dim)
    g3, be3 = bn(ks[10], ks[11], out_dim)

    return {
        "layer1": (w1, b1, g1, be1),
        "layer2": (w2, b2, g2, be2),
        "layer3": (w3, b3, g3, be3),
    }


def _reference_forward(x, params, num_layers=3, eps=1e-5):
    """Pure-jnp reference.

    Follows the literal PyTorch computation order (bias added before BN) but
    mirrors the kernel's precision choices (bf16 matmul operands, f32 accumulate,
    f32 BN math) so the comparison isolates structural correctness.
    """
    def layer(h, w, b, g, be, relu):
        y = jnp.dot(h.astype(jnp.bfloat16), w.T.astype(jnp.bfloat16),
                    preferred_element_type=jnp.float32) + b
        mean = jnp.mean(y, axis=0, keepdims=True)
        var = jnp.mean((y - mean) ** 2, axis=0, keepdims=True)
        y = (y - mean) / jnp.sqrt(var + eps) * g + be
        return jnp.maximum(y, 0.0) if relu else y

    if num_layers == 3:
        x = layer(x, *params["layer1"], True)
        x = layer(x, *params["layer2"], True)
        x = layer(x, *params["layer3"], False)
    elif num_layers == 2:
        x = layer(x, *params["layer1"], True)
        x = layer(x, *params["layer3"], False)
    else:
        raise Exception
    return x


if __name__ == "__main__":
    key = jax.random.PRNGKey(0)

    # --- Test 1: lane-aligned shapes (the common case: hidden fc is 2048-d). ---
    batch, in_dim, hidden_dim, out_dim = 8, 128, 256, 256
    k_x, k_p, k_x2, k_p2 = jax.random.split(key, 4)
    x = jax.random.normal(k_x, (batch, in_dim), dtype=jnp.float32)
    params = _init_params(k_p, in_dim, hidden_dim, out_dim)

    out = jax.block_until_ready(projection_mlp_forward(x, params, num_layers=3))
    ref = _reference_forward(x, params, num_layers=3)
    assert out.shape == (batch, out_dim)
    assert out.dtype == x.dtype
    assert jnp.allclose(out, ref, atol=2e-2, rtol=2e-2), "mismatch vs reference (3-layer)"

    out2 = jax.block_until_ready(projection_mlp_forward(x, params, num_layers=2))
    ref2 = _reference_forward(x, params, num_layers=2)
    assert jnp.allclose(out2, ref2, atol=2e-2, rtol=2e-2), "mismatch vs reference (2-layer)"

    # --- Test 2: non-lane-aligned feature dims exercise the padding path. ---
    in_dim_u, hidden_u, out_dim_u = 96, 192, 200
    x_u = jax.random.normal(k_x2, (batch, in_dim_u), dtype=jnp.float32)
    params_u = _init_params(k_p2, in_dim_u, hidden_u, out_dim_u)
    out_u = jax.block_until_ready(projection_mlp_forward(x_u, params_u, num_layers=3))
    ref_u = _reference_forward(x_u, params_u, num_layers=3)
    assert out_u.shape == (batch, out_dim_u)
    assert jnp.allclose(out_u, ref_u, atol=2e-2, rtol=2e-2), "mismatch vs reference (padded)"

    print("KERNEL_OK")
</pallas_src>

<mosaic_0001>
module attributes {stable_mosaic.version = 11 : i64} {
  func.func @_proj_mlp_kernel(%arg0: memref<8x128xbf16, #tpu.memory_space<vmem>>, %arg1: memref<128x256xbf16, #tpu.memory_space<vmem>>, %arg2: memref<2x256xf32, #tpu.memory_space<vmem>>, %arg3: memref<256x256xbf16, #tpu.memory_space<vmem>>, %arg4: memref<2x256xf32, #tpu.memory_space<vmem>>, %arg5: memref<256x256xbf16, #tpu.memory_space<vmem>>, %arg6: memref<2x256xf32, #tpu.memory_space<vmem>>, %arg7: memref<8x256xf32, #tpu.memory_space<vmem>>) attributes {dimension_semantics = [], scalar_prefetch = 0 : i64, scratch_operands = 0 : i64, tpu.core_type = #tpu.core_type<tc>} {
    %c0 = arith.constant 0 : index
    %c0_0 = arith.constant 0 : index
    %0 = vector.load %arg0[%c0, %c0_0] : memref<8x128xbf16, #tpu.memory_space<vmem>>, vector<8x128xbf16>
    %c0_1 = arith.constant 0 : index
    %c0_2 = arith.constant 0 : index
    %1 = vector.load %arg1[%c0_1, %c0_2] : memref<128x256xbf16, #tpu.memory_space<vmem>>, vector<128x256xbf16>
    %c0_3 = arith.constant 0 : index
    %c0_4 = arith.constant 0 : index
    %2 = vector.load %arg2[%c0_3, %c0_4] : memref<2x256xf32, #tpu.memory_space<vmem>>, vector<2x256xf32>
    %3 = vector.extract_strided_slice %2 {offsets = [0, 0], sizes = [1, 256], strides = [1, 1]} : vector<2x256xf32> to vector<1x256xf32>
    %4 = vector.extract_strided_slice %2 {offsets = [1, 0], sizes = [1, 256], strides = [1, 1]} : vector<2x256xf32> to vector<1x256xf32>
    %cst = arith.constant dense<0.000000e+00> : vector<8x256xf32>
    %5 = tpu.matmul %0, %1, %cst {dimension_numbers = #tpu.dot_dimension_numbers<[1], [0], [0], [1], [0, 0, 1, 1], [], []>} : vector<8x128xbf16>, vector<128x256xbf16>, vector<8x256xf32> -> vector<8x256xf32>
    %cst_5 = arith.constant dense<0.000000e+00> : vector<256xf32>
    %6 = vector.multi_reduction <add>, %5, %cst_5 [0] : vector<8x256xf32> to vector<256xf32>
    %7 = vector.shape_cast %6 : vector<256xf32> to vector<1x256xf32>
    %cst_6 = arith.constant 1.250000e-01 : f32
    %8 = vector.broadcast %cst_6 : f32 to vector<1x256xf32>
    %9 = arith.mulf %7, %8 : vector<1x256xf32>
    %10 = arith.mulf %5, %5 : vector<8x256xf32>
    %cst_7 = arith.constant dense<0.000000e+00> : vector<256xf32>
    %11 = vector.multi_reduction <add>, %10, %cst_7 [0] : vector<8x256xf32> to vector<256xf32>
    %12 = vector.shape_cast %11 : vector<256xf32> to vector<1x256xf32>
    %cst_8 = arith.constant 1.250000e-01 : f32
    %13 = vector.broadcast %cst_8 : f32 to vector<1x256xf32>
    %14 = arith.mulf %12, %13 : vector<1x256xf32>
    %15 = arith.mulf %9, %9 : vector<1x256xf32>
    %16 = arith.subf %14, %15 : vector<1x256xf32>
    %cst_9 = arith.constant 0.000000e+00 : f32
    %17 = vector.broadcast %cst_9 : f32 to vector<1x256xf32>
    %18 = arith.maximumf %16, %17 : vector<1x256xf32>
    %cst_10 = arith.constant 9.99999974E-6 : f32
    %19 = vector.broadcast %cst_10 : f32 to vector<1x256xf32>
    %20 = arith.addf %18, %19 : vector<1x256xf32>
    %21 = math.rsqrt %20 : vector<1x256xf32>
    %22 = arith.mulf %3, %21 : vector<1x256xf32>
    %23 = arith.mulf %9, %22 : vector<1x256xf32>
    %24 = arith.subf %4, %23 : vector<1x256xf32>
    %25 = vector.broadcast %22 : vector<1x256xf32> to vector<8x256xf32>
    %26 = arith.mulf %5, %25 : vector<8x256xf32>
    %27 = vector.broadcast %24 : vector<1x256xf32> to vector<8x256xf32>
    %28 = arith.addf %26, %27 : vector<8x256xf32>
    %cst_11 = arith.constant 0.000000e+00 : f32
    %29 = vector.broadcast %cst_11 : f32 to vector<8x256xf32>
    %30 = arith.maximumf %28, %29 : vector<8x256xf32>
    %31 = arith.truncf %30 : vector<8x256xf32> to vector<8x256xbf16>
    %c0_12 = arith.constant 0 : index
    %c0_13 = arith.constant 0 : index
    %32 = vector.load %arg3[%c0_12, %c0_13] : memref<256x256xbf16, #tpu.memory_space<vmem>>, vector<256x256xbf16>
    %c0_14 = arith.constant 0 : index
    %c0_15 = arith.constant 0 : index
    %33 = vector.load %arg4[%c0_14, %c0_15] : memref<2x256xf32, #tpu.memory_space<vmem>>, vector<2x256xf32>
    %34 = vector.extract_strided_slice %33 {offsets = [0, 0], sizes = [1, 256], strides = [1, 1]} : vector<2x256xf32> to vector<1x256xf32>
    %35 = vector.extract_strided_slice %33 {offsets = [1, 0], sizes = [1, 256], strides = [1, 1]} : vector<2x256xf32> to vector<1x256xf32>
    %cst_16 = arith.constant dense<0.000000e+00> : vector<8x256xf32>
    %36 = tpu.matmul %31, %32, %cst_16 {dimension_numbers = #tpu.dot_dimension_numbers<[1], [0], [0], [1], [0, 0, 1, 1], [], []>} : vector<8x256xbf16>, vector<256x256xbf16>, vector<8x256xf32> -> vector<8x256xf32>
    %cst_17 = arith.constant dense<0.000000e+00> : vector<256xf32>
    %37 = vector.multi_reduction <add>, %36, %cst_17 [0] : vector<8x256xf32> to vector<256xf32>
    %38 = vector.shape_cast %37 : vector<256xf32> to vector<1x256xf32>
    %cst_18 = arith.constant 1.250000e-01 : f32
    %39 = vector.broadcast %cst_18 : f32 to vector<1x256xf32>
    %40 = arith.mulf %38, %39 : vector<1x256xf32>
    %41 = arith.mulf %36, %36 : vector<8x256xf32>
    %cst_19 = arith.constant dense<0.000000e+00> : vector<256xf32>
    %42 = vector.multi_reduction <add>, %41, %cst_19 [0] : vector<8x256xf32> to vector<256xf32>
    %43 = vector.shape_cast %42 : vector<256xf32> to vector<1x256xf32>
    %cst_20 = arith.constant 1.250000e-01 : f32
    %44 = vector.broadcast %cst_20 : f32 to vector<1x256xf32>
    %45 = arith.mulf %43, %44 : vector<1x256xf32>
    %46 = arith.mulf %40, %40 : vector<1x256xf32>
    %47 = arith.subf %45, %46 : vector<1x256xf32>
    %cst_21 = arith.constant 0.000000e+00 : f32
    %48 = vector.broadcast %cst_21 : f32 to vector<1x256xf32>
    %49 = arith.maximumf %47, %48 : vector<1x256xf32>
    %cst_22 = arith.constant 9.99999974E-6 : f32
    %50 = vector.broadcast %cst_22 : f32 to vector<1x256xf32>
    %51 = arith.addf %49, %50 : vector<1x256xf32>
    %52 = math.rsqrt %51 : vector<1x256xf32>
    %53 = arith.mulf %34, %52 : vector<1x256xf32>
    %54 = arith.mulf %40, %53 : vector<1x256xf32>
    %55 = arith.subf %35, %54 : vector<1x256xf32>
    %56 = vector.broadcast %53 : vector<1x256xf32> to vector<8x256xf32>
    %57 = arith.mulf %36, %56 : vector<8x256xf32>
    %58 = vector.broadcast %55 : vector<1x256xf32> to vector<8x256xf32>
    %59 = arith.addf %57, %58 : vector<8x256xf32>
    %cst_23 = arith.constant 0.000000e+00 : f32
    %60 = vector.broadcast %cst_23 : f32 to vector<8x256xf32>
    %61 = arith.maximumf %59, %60 : vector<8x256xf32>
    %62 = arith.truncf %61 : vector<8x256xf32> to vector<8x256xbf16>
    %c0_24 = arith.constant 0 : index
    %c0_25 = arith.constant 0 : index
    %63 = vector.load %arg5[%c0_24, %c0_25] : memref<256x256xbf16, #tpu.memory_space<vmem>>, vector<256x256xbf16>
    %c0_26 = arith.constant 0 : index
    %c0_27 = arith.constant 0 : index
    %64 = vector.load %arg6[%c0_26, %c0_27] : memref<2x256xf32, #tpu.memory_space<vmem>>, vector<2x256xf32>
    %65 = vector.extract_strided_slice %64 {offsets = [0, 0], sizes = [1, 256], strides = [1, 1]} : vector<2x256xf32> to vector<1x256xf32>
    %66 = vector.extract_strided_slice %64 {offsets = [1, 0], sizes = [1, 256], strides = [1, 1]} : vector<2x256xf32> to vector<1x256xf32>
    %cst_28 = arith.constant dense<0.000000e+00> : vector<8x256xf32>
    %67 = tpu.matmul %62, %63, %cst_28 {dimension_numbers = #tpu.dot_dimension_numbers<[1], [0], [0], [1], [0, 0, 1, 1], [], []>} : vector<8x256xbf16>, vector<256x256xbf16>, vector<8x256xf32> -> vector<8x256xf32>
    %cst_29 = arith.constant dense<0.000000e+00> : vector<256xf32>
    %68 = vector.multi_reduction <add>, %67, %cst_29 [0] : vector<8x256xf32> to vector<256xf32>
    %69 = vector.shape_cast %68 : vector<256xf32> to vector<1x256xf32>
    %cst_30 = arith.constant 1.250000e-01 : f32
    %70 = vector.broadcast %cst_30 : f32 to vector<1x256xf32>
    %71 = arith.mulf %69, %70 : vector<1x256xf32>
    %72 = arith.mulf %67, %67 : vector<8x256xf32>
    %cst_31 = arith.constant dense<0.000000e+00> : vector<256xf32>
    %73 = vector.multi_reduction <add>, %72, %cst_31 [0] : vector<8x256xf32> to vector<256xf32>
    %74 = vector.shape_cast %73 : vector<256xf32> to vector<1x256xf32>
    %cst_32 = arith.constant 1.250000e-01 : f32
    %75 = vector.broadcast %cst_32 : f32 to vector<1x256xf32>
    %76 = arith.mulf %74, %75 : vector<1x256xf32>
    %77 = arith.mulf %71, %71 : vector<1x256xf32>
    %78 = arith.subf %76, %77 : vector<1x256xf32>
    %cst_33 = arith.constant 0.000000e+00 : f32
    %79 = vector.broadcast %cst_33 : f32 to vector<1x256xf32>
    %80 = arith.maximumf %78, %79 : vector<1x256xf32>
    %cst_34 = arith.constant 9.99999974E-6 : f32
    %81 = vector.broadcast %cst_34 : f32 to vector<1x256xf32>
    %82 = arith.addf %80, %81 : vector<1x256xf32>
    %83 = math.rsqrt %82 : vector<1x256xf32>
    %84 = arith.mulf %65, %83 : vector<1x256xf32>
    %85 = arith.mulf %71, %84 : vector<1x256xf32>
    %86 = arith.subf %66, %85 : vector<1x256xf32>
    %87 = vector.broadcast %84 : vector<1x256xf32> to vector<8x256xf32>
    %88 = arith.mulf %67, %87 : vector<8x256xf32>
    %89 = vector.broadcast %86 : vector<1x256xf32> to vector<8x256xf32>
    %90 = arith.addf %88, %89 : vector<8x256xf32>
    %c0_35 = arith.constant 0 : index
    %c0_36 = arith.constant 0 : index
    %91 = vector.load %arg7[%c0_35, %c0_36] : memref<8x256xf32, #tpu.memory_space<vmem>>, vector<8x256xf32>
    tpu.vector_store %arg7[%c0_35, %c0_36], %90 {strides = array<i32>} : memref<8x256xf32, #tpu.memory_space<vmem>>, vector<8x256xf32>,
    return
  }
}

</mosaic_0001>

<llo_original>
// kernel: tpu_custom_call.1
$region0: #{tpu_custom_call.1}
  #allocation0 [shape = 'u32[]', space=smem, size = 0x4, offset = 0x4, fixed_abs, tag = 'smem constant byte address 0x4 - core index']
  #allocation1 [shape = 'u32[72,128]{1,0:T(1,128)}', space=vmem, size = 0x9000, scoped, tag = 'internal scratch']
  %s0 = inlined_call_operand.hbm [shape: bf16[8,128], index: 0, kind: input, shape index: {}]
  %s1 = inlined_call_operand.hbm [shape: bf16[128,256], index: 1, kind: input, shape index: {}]
  %s2 = inlined_call_operand.hbm [shape: f32[2,256], index: 2, kind: input, shape index: {}]
  %s3 = inlined_call_operand.hbm [shape: bf16[256,256], index: 3, kind: input, shape index: {}]
  %s4 = inlined_call_operand.hbm [shape: f32[2,256], index: 4, kind: input, shape index: {}]
  %s5 = inlined_call_operand.hbm [shape: bf16[256,256], index: 5, kind: input, shape index: {}]
  %s6 = inlined_call_operand.vmem [shape: f32[2,256], index: 6, kind: input, shape index: {}]
  %s7 = inlined_call_operand.hbm [shape: f32[8,256], index: 7, kind: output, shape index: {}]
  %s8 = sld [smem:[#allocation0]]
  $region62: #{tpu_custom_call.1} parent=0
    _
  %s10 = ssub.s32 1, %s8
  %s11 = scalar_select 0, %s10, %s8
  $region1: #{tpu_custom_call.1} parent=0
    #allocation2 [shape = 'u8[2048]{0}', space=vmem, size = 0x800, scoped, tag = 'input window, operand 0, single buffered']
    #allocation3 [shape = 's32[1]{0}', space=sflag, size = 0x4, scoped, tag = 'scoped memory for tpu_custom_call.1']
    #allocation4 [shape = 's32[1]{0}', space=sflag, size = 0x4, scoped, tag = 'scoped memory for tpu_custom_call.1']
    #allocation5 [shape = 'u8[65536]{0}', space=vmem, size = 0x10000, scoped, tag = 'input window, operand 1, single buffered']
    #allocation6 [shape = 's32[1]{0}', space=sflag, size = 0x4, scoped, tag = 'scoped memory for tpu_custom_call.1']
    #allocation7 [shape = 'u8[2048]{0}', space=vmem, size = 0x800, scoped, tag = 'input window, operand 2, single buffered']
    #allocation8 [shape = 'u8[131072]{0}', space=vmem, size = 0x20000, scoped, tag = 'input window, operand 3, single buffered']
    #allocation9 [shape = 's32[1]{0}', space=sflag, size = 0x4, scoped, tag = 'scoped memory for tpu_custom_call.1']
    #allocation10 [shape = 'u8[2048]{0}', space=vmem, size = 0x800, scoped, tag = 'input window, operand 4, single buffered']
    #allocation11 [shape = 'u8[131072]{0}', space=vmem, size = 0x20000, scoped, tag = 'input window, operand 5, single buffered']
    #allocation12 [shape = 's32[1]{0}', space=sflag, size = 0x4, scoped, tag = 'scoped memory for tpu_custom_call.1']
    #allocation13 [shape = 'u8[8192]{0}', space=vmem, size = 0x2000, scoped, tag = 'output window, operand 0, single buffered']
    %12 = vsyncpa [#allocation3], 0
    %13 = vsyncpa [#allocation6], 0
    %14 = vsyncpa [#allocation9], 0
    %15 = vsyncpa [#allocation12], 0
    %16 = vsyncpa [#allocation4], 0
    // Predicated region
    $region2: #{tpu_custom_call.1} parent=1 // pred_check
      _
    $region3: #{tpu_custom_call.1} parent=1 // pred_check_branch
      %18 = sbr.rel (0) target = $region5
    $region4: #{tpu_custom_call.1} parent=1 // pred_region
      %20 = vsyncadd [#allocation3], 0
      %s22 = sshll.u32 %s0, 4
      %s23 = int_to_ptr.hbm [resolvable:$true] %s22
      %s24 = sshll.u32 [#allocation2], 4
      %s25 = int_to_ptr.vmem [resolvable:$true] %s24
      %27 = dma.hbm_to_vmem [thread:$0]  %s23, 64, %s25, [#allocation3]
    $region5: #{tpu_custom_call.1} parent=1 // pred_fallthru
      _
    // Predicated region
    $region6: #{tpu_custom_call.1} parent=1 // pred_check
      _
    $region7: #{tpu_custom_call.1} parent=1 // pred_check_branch
      %29 = sbr.rel (0) target = $region9
    $region8: #{tpu_custom_call.1} parent=1 // pred_region
      %31 = vsyncadd [#allocation6], 0
      %s32 = sshll.u32 %s1, 4
      %s33 = int_to_ptr.hbm [resolvable:$true] %s32
      %s34 = sshll.u32 [#allocation5], 4
      %s35 = int_to_ptr.vmem [resolvable:$true] %s34
      %40 = dma.hbm_to_vmem [thread:$0]  %s33, 2048, %s35, [#allocation6], 128, 128, 8
    $region9: #{tpu_custom_call.1} parent=1 // pred_fallthru
      _
    // Predicated region
    $region10: #{tpu_custom_call.1} parent=1 // pred_check
      _
    $region11: #{tpu_custom_call.1} parent=1 // pred_check_branch
      %42 = sbr.rel (0) target = $region13
    $region12: #{tpu_custom_call.1} parent=1 // pred_region
      %44 = vsyncadd [#allocation6], 0
      %s46 = sshll.u32 %s2, 4
      %s47 = int_to_ptr.hbm [resolvable:$true] %s46
      %s48 = sshll.u32 [#allocation7], 4
      %s49 = int_to_ptr.vmem [resolvable:$true] %s48
      %51 = dma.hbm_to_vmem [thread:$0]  %s47, 64, %s49, [#allocation6]
    $region13: #{tpu_custom_call.1} parent=1 // pred_fallthru
      _
    // Predicated region
    $region14: #{tpu_custom_call.1} parent=1 // pred_check
      _
    $region15: #{tpu_custom_call.1} parent=1 // pred_check_branch
      %53 = sbr.rel (0) target = $region17
    $region16: #{tpu_custom_call.1} parent=1 // pred_region
      %55 = vsyncadd [#allocation9], 0
      %s56 = sshll.u32 %s3, 4
      %s57 = int_to_ptr.hbm [resolvable:$true] %s56
      %s58 = sshll.u32 [#allocation8], 4
      %s59 = int_to_ptr.vmem [resolvable:$true] %s58
      %64 = dma.hbm_to_vmem [thread:$0]  %s57, 4096, %s59, [#allocation9], 128, 128, 8
    $region17: #{tpu_custom_call.1} parent=1 // pred_fallthru
      _
    // Predicated region
    $region18: #{tpu_custom_call.1} parent=1 // pred_check
      _
    $region19: #{tpu_custom_call.1} parent=1 // pred_check_branch
      %66 = sbr.rel (0) target = $region21
    $region20: #{tpu_custom_call.1} parent=1 // pred_region
      %68 = vsyncadd [#allocation9], 0
      %s70 = sshll.u32 %s4, 4
      %s71 = int_to_ptr.hbm [resolvable:$true] %s70
      %s72 = sshll.u32 [#allocation10], 4
      %s73 = int_to_ptr.vmem [resolvable:$true] %s72
      %75 = dma.hbm_to_vmem [thread:$0]  %s71, 64, %s73, [#allocation9]
    $region21: #{tpu_custom_call.1} parent=1 // pred_fallthru
      _
    // Predicated region
    $region22: #{tpu_custom_call.1} parent=1 // pred_check
      _
    $region23: #{tpu_custom_call.1} parent=1 // pred_check_branch
      %77 = sbr.rel (0) target = $region25
    $region24: #{tpu_custom_call.1} parent=1 // pred_region
      %79 = vsyncadd [#allocation12], 0
      %s80 = sshll.u32 %s5, 4
      %s81 = int_to_ptr.hbm [resolvable:$true] %s80
      %s82 = sshll.u32 [#allocation11], 4
      %s83 = int_to_ptr.vmem [resolvable:$true] %s82
      %88 = dma.hbm_to_vmem [thread:$0]  %s81, 4096, %s83, [#allocation12], 128, 128, 8
    $region25: #{tpu_custom_call.1} parent=1 // pred_fallthru
      _
    // Predicated region
    $region26: #{tpu_custom_call.1} parent=1 // pred_check
      _
    $region27: #{tpu_custom_call.1} parent=1 // pred_check_branch
      %90 = sbr.rel (0) target = $region29
    $region28: #{tpu_custom_call.1} parent=1 // pred_region
      _
    $region29: #{tpu_custom_call.1} parent=1 // pred_fallthru
      _
    // Predicated region
    $region30: #{tpu_custom_call.1} parent=1 // pred_check
      _
    $region31: #{tpu_custom_call.1} parent=1 // pred_check_branch
      %92 = sbr.rel (0) target = $region33
    $region32: #{tpu_custom_call.1} parent=1 // pred_region
      %94 = dma.done [#allocation3], 64
    $region33: #{tpu_custom_call.1} parent=1 // pred_fallthru
      _
    // Predicated region
    $region34: #{tpu_custom_call.1} parent=1 // pred_check
      _
    $region35: #{tpu_custom_call.1} parent=1 // pred_check_branch
      %96 = sbr.rel (0) target = $region37
    $region36: #{tpu_custom_call.1} parent=1 // pred_region
      %98 = dma.done [#allocation6], 2048
    $region37: #{tpu_custom_call.1} parent=1 // pred_fallthru
      _
    // Predicated region
    $region38: #{tpu_custom_call.1} parent=1 // pred_check
      _
    $region39: #{tpu_custom_call.1} parent=1 // pred_check_branch
      %100 = sbr.rel (0) target = $region41
    $region40: #{tpu_custom_call.1} parent=1 // pred_region
      %102 = dma.done [#allocation6], 64
    $region41: #{tpu_custom_call.1} parent=1 // pred_fallthru
      _
    // Predicated region
    $region42: #{tpu_custom_call.1} parent=1 // pred_check
      _
    $region43: #{tpu_custom_call.1} parent=1 // pred_check_branch
      %104 = sbr.rel (0) target = $region45
    $region44: #{tpu_custom_call.1} parent=1 // pred_region
      %106 = dma.done [#allocation9], 4096
    $region45: #{tpu_custom_call.1} parent=1 // pred_fallthru
      _
    // Predicated region
    $region46: #{tpu_custom_call.1} parent=1 // pred_check
      _
    $region47: #{tpu_custom_call.1} parent=1 // pred_check_branch
      %108 = sbr.rel (0) target = $region49
    $region48: #{tpu_custom_call.1} parent=1 // pred_region
      %110 = dma.done [#allocation9], 64
    $region49: #{tpu_custom_call.1} parent=1 // pred_fallthru
      _
    // Predicated region
    $region50: #{tpu_custom_call.1} parent=1 // pred_check
      _
    $region51: #{tpu_custom_call.1} parent=1 // pred_check_branch
      %112 = sbr.rel (0) target = $region53
    $region52: #{tpu_custom_call.1} parent=1 // pred_region
      %114 = dma.done [#allocation12], 4096
    $region53: #{tpu_custom_call.1} parent=1 // pred_fallthru
      _
    %v115 = vld [vmem:[#allocation2] sm:$0xf]
    %v116 = vld [vmem:[#allocation5] sm:$0xff]
    %v117 = vld [vmem:[#allocation5 + $0x8] sm:$0xff]
    %v118 = vld [vmem:[#allocation5 + $0x10] sm:$0xff]
    %v119 = vld [vmem:[#allocation5 + $0x18] sm:$0xff]
    %v120 = vld [vmem:[#allocation5 + $0x20] sm:$0xff]
    %v121 = vld [vmem:[#allocation5 + $0x28] sm:$0xff]
    %v122 = vld [vmem:[#allocation5 + $0x30] sm:$0xff]
    %v123 = vld [vmem:[#allocation5 + $0x38] sm:$0xff]
    %v124 = vld [vmem:[#allocation5 + $0x40] sm:$0xff]
    %v125 = vld [vmem:[#allocation5 + $0x48] sm:$0xff]
    %v126 = vld [vmem:[#allocation5 + $0x50] sm:$0xff]
    %v127 = vld [vmem:[#allocation5 + $0x58] sm:$0xff]
    %v128 = vld [vmem:[#allocation5 + $0x60] sm:$0xff]
    %v129 = vld [vmem:[#allocation5 + $0x68] sm:$0xff]
    %v130 = vld [vmem:[#allocation5 + $0x70] sm:$0xff]
    %v131 = vld [vmem:[#allocation5 + $0x78] sm:$0xff]
    %v132 = vld [vmem:[#allocation7] sm:$0xf]
    %v149 = vunpack.c.l.b16 %v116
    %v150 = vunpack.c.h.b16 %v116
    %v151 = vunpack.c.l.b16 %v117
    %v152 = vunpack.c.h.b16 %v117
    %v153 = vunpack.c.l.b16 %v118
    %v154 = vunpack.c.h.b16 %v118
    %v155 = vunpack.c.l.b16 %v119
    %v156 = vunpack.c.h.b16 %v119
    %v157 = vunpack.c.l.b16 %v120
    %v158 = vunpack.c.h.b16 %v120
    %v159 = vunpack.c.l.b16 %v121
    %v160 = vunpack.c.h.b16 %v121
    %v161 = vunpack.c.l.b16 %v122
    %v162 = vunpack.c.h.b16 %v122
    %v163 = vunpack.c.l.b16 %v123
    %v164 = vunpack.c.h.b16 %v123
    %v165 = vunpack.c.l.b16 %v124
    %v166 = vunpack.c.h.b16 %v124
    %v167 = vunpack.c.l.b16 %v125
    %v168 = vunpack.c.h.b16 %v125
    %v169 = vunpack.c.l.b16 %v126
    %v170 = vunpack.c.h.b16 %v126
    %v171 = vunpack.c.l.b16 %v127
    %v172 = vunpack.c.h.b16 %v127
    %v173 = vunpack.c.l.b16 %v128
    %v174 = vunpack.c.h.b16 %v128
    %v175 = vunpack.c.l.b16 %v129
    %v176 = vunpack.c.h.b16 %v129
    %v177 = vunpack.c.l.b16 %v130
    %v178 = vunpack.c.h.b16 %v130
    %v179 = vunpack.c.l.b16 %v131
    %v180 = vunpack.c.h.b16 %v131
    %v181 = vpack.c.b16 %v151, %v149
    %v182 = vpack.c.b16 %v152, %v150
    %v183 = vpack.c.b16 %v155, %v153
    %v184 = vpack.c.b16 %v156, %v154
    %v185 = vpack.c.b16 %v159, %v157
    %v186 = vpack.c.b16 %v160, %v158
    %v187 = vpack.c.b16 %v163, %v161
    %v188 = vpack.c.b16 %v164, %v162
    %v189 = vpack.c.b16 %v167, %v165
    %v190 = vpack.c.b16 %v168, %v166
    %v191 = vpack.c.b16 %v171, %v169
    %v192 = vpack.c.b16 %v172, %v170
    %v193 = vpack.c.b16 %v175, %v173
    %v194 = vpack.c.b16 %v176, %v174
    %v195 = vpack.c.b16 %v179, %v177
    %v196 = vpack.c.b16 %v180, %v178
    %213 = vmatpush.bf16.msra.mxu0 %v195
    %214 = vmatpush.bf16.msra.mxu0 %v193
    %215 = vmatpush.bf16.msra.mxu0 %v191
    %216 = vmatpush.bf16.msra.mxu0 %v189
    %217 = vmatpush.bf16.msra.mxu0 %v187
    %218 = vmatpush.bf16.msra.mxu0 %v185
    %219 = vmatpush.bf16.msra.mxu0 %v183
    %220 = vmatpush.bf16.msra.mxu0 %v181
    %221 = vmatmul.bf16.gmra.mxu0 %v115
    %v222 = vpop.f32.mrf.mxu0
    %v223 = vadd.f32 0.0, %v222
    %v224 = vpop.f32.mrf.mxu0
    %225 = vdwg.mxu0
    %226 = vmatpush.bf16.msra.mxu0 %v196
    %227 = vmatpush.bf16.msra.mxu0 %v194
    %228 = vmatpush.bf16.msra.mxu0 %v192
    %229 = vmatpush.bf16.msra.mxu0 %v190
    %230 = vmatpush.bf16.msra.mxu0 %v188
    %231 = vmatpush.bf16.msra.mxu0 %v186
    %232 = vmatpush.bf16.msra.mxu0 %v184
    %233 = vmatpush.bf16.msra.mxu0 %v182
    %234 = vmatmul.bf16.gmra.mxu0 %v115
    %v235 = vpop.f32.mrf.mxu0
    %v236 = vadd.f32 0.0, %v235
    %v237 = vpop.f32.mrf.mxu0
    %238 = vdwg.mxu0
    %v239 = vrot.slane %v223, 4
    %v240 = vadd.f32 %v223, %v239
    %v241 = vrot.slane %v240, 2
    %v242 = vadd.f32 %v240, %v241
    %v243 = vrot.slane %v242, 1
    %v244 = vadd.f32 %v242, %v243
    %v245 = vrot.slane %v236, 4
    %v246 = vadd.f32 %v236, %v245
    %v247 = vrot.slane %v246, 2
    %v248 = vadd.f32 %v246, %v247
    %v249 = vrot.slane %v248, 1
    %v250 = vadd.f32 %v248, %v249
    %v251 = vmul.f32 %v244, 0.125
    %v252 = vmul.f32 %v250, 0.125
    %v253 = vmul.f32 %v223, %v223
    %v254 = vmul.f32 %v236, %v236
    %v255 = vrot.slane %v253, 4
    %v256 = vadd.f32 %v253, %v255
    %v257 = vrot.slane %v256, 2
    %v258 = vadd.f32 %v256, %v257
    %v259 = vrot.slane %v258, 1
    %v260 = vadd.f32 %v258, %v259
    %v261 = vrot.slane %v254, 4
    %v262 = vadd.f32 %v254, %v261
    %v263 = vrot.slane %v262, 2
    %v264 = vadd.f32 %v262, %v263
    %v265 = vrot.slane %v264, 1
    %v266 = vadd.f32 %v264, %v265
    %v267 = vmul.f32 %v260, 0.125
    %v268 = vmul.f32 %v266, 0.125
    %v269 = vmul.f32 %v251, %v251
    %v270 = vmul.f32 %v252, %v252
    %v271 = vsub.f32 %v267, %v269
    %v272 = vsub.f32 %v268, %v270
    %v273 = vmax.f32 %v271, 0.0
    %v274 = vmax.f32 %v272, 0.0
    %v275 = vadd.f32 %v273, 1e-05
    %v276 = vadd.f32 %v274, 1e-05
    %v277 = vrsqrt.pop %v275
    %v278 = vmul.f32 %v277, %v275
    %v279 = vmul.f32 %v278, %v277
    %v280 = vmul.f32 0.5, %v279
    %v281 = vsub.f32 1.5, %v280
    %v282 = vmul.f32 %v277, %v281
    %vm283 = vweird.f32 %v275
    %vm284 = vweird.f32 %v277
    %vm285 = vmor %vm283, %vm284
    %v286 = vsel %vm285, %v277, %v282
    %v287 = vrsqrt.pop %v276
    %v288 = vmul.f32 %v287, %v276
    %v289 = vmul.f32 %v288, %v287
    %v290 = vmul.f32 0.5, %v289
    %v291 = vsub.f32 1.5, %v290
    %v292 = vmul.f32 %v287, %v291
    %vm293 = vweird.f32 %v276
    %vm294 = vweird.f32 %v287
    %vm295 = vmor %vm293, %vm294
    %v296 = vsel %vm295, %v287, %v292
    %v299 = vrot.slane %v296, 6
    %vm300 = vcmask 1041408
    %v301 = vsel %vm300, %v286, %v299
    %v303 = vmul.f32 %v132, %v301
    %v305 = vperm.slane %v303, 0
    %v306 = vperm.slane %v303, 2
    %v309 = vmul.f32 %v251, %v305
    %v310 = vmul.f32 %v252, %v306
    %v313 = vrot.slane %v310, 6
    %v314 = vsel %vm300, %v309, %v313
    %v315 = vrot.slane %v314, 7
    %v317 = vsub.f32 %v132, %v315
    %v318 = vperm.slane %v305, 0
    %v319 = vperm.slane %v306, 0
    %v320 = vmul.f32 %v223, %v318
    %v321 = vmul.f32 %v236, %v319
    %v323 = vperm.slane %v317, 1
    %v324 = vperm.slane %v317, 3
    %v327 = vperm.slane %v323, 1
    %v328 = vperm.slane %v324, 1
    %v329 = vadd.f32 %v320, %v327
    %v330 = vadd.f32 %v321, %v328
    %v331 = vmax.f32 %v329, 0.0
    %v332 = vmax.f32 %v330, 0.0
    %v333 = vpack.c.bf16 %v331, %v331
    %v334 = vpack.c.bf16 %v332, %v332
    %v335 = vld [vmem:[#allocation8] sm:$0xff]
    %v336 = vld [vmem:[#allocation8 + $0x8] sm:$0xff]
    %v337 = vld [vmem:[#allocation8 + $0x10] sm:$0xff]
    %v338 = vld [vmem:[#allocation8 + $0x18] sm:$0xff]
    %v339 = vld [vmem:[#allocation8 + $0x20] sm:$0xff]
    %v340 = vld [vmem:[#allocation8 + $0x28] sm:$0xff]
    %v341 = vld [vmem:[#allocation8 + $0x30] sm:$0xff]
    %v342 = vld [vmem:[#allocation8 + $0x38] sm:$0xff]
    %v343 = vld [vmem:[#allocation8 + $0x40] sm:$0xff]
    %v344 = vld [vmem:[#allocation8 + $0x48] sm:$0xff]
    %v345 = vld [vmem:[#allocation8 + $0x50] sm:$0xff]
    %v346 = vld [vmem:[#allocation8 + $0x58] sm:$0xff]
    %v347 = vld [vmem:[#allocation8 + $0x60] sm:$0xff]
    %v348 = vld [vmem:[#allocation8 + $0x68] sm:$0xff]
    %v349 = vld [vmem:[#allocation8 + $0x70] sm:$0xff]
    %v350 = vld [vmem:[#allocation8 + $0x78] sm:$0xff]
    %v351 = vld [vmem:[#allocation8 + $0x80] sm:$0xff]
    %v352 = vld [vmem:[#allocation8 + $0x88] sm:$0xff]
    %v353 = vld [vmem:[#allocation8 + $0x90] sm:$0xff]
    %v354 = vld [vmem:[#allocation8 + $0x98] sm:$0xff]
    %v355 = vld [vmem:[#allocation8 + $0xa0] sm:$0xff]
    %v356 = vld [vmem:[#allocation8 + $0xa8] sm:$0xff]
    %v357 = vld [vmem:[#allocation8 + $0xb0] sm:$0xff]
    %v358 = vld [vmem:[#allocation8 + $0xb8] sm:$0xff]
    %v359 = vld [vmem:[#allocation8 + $0xc0] sm:$0xff]
    %v360 = vld [vmem:[#allocation8 + $0xc8] sm:$0xff]
    %v361 = vld [vmem:[#allocation8 + $0xd0] sm:$0xff]
    %v362 = vld [vmem:[#allocation8 + $0xd8] sm:$0xff]
    %v363 = vld [vmem:[#allocation8 + $0xe0] sm:$0xff]
    %v364 = vld [vmem:[#allocation8 + $0xe8] sm:$0xff]
    %v365 = vld [vmem:[#allocation8 + $0xf0] sm:$0xff]
    %v366 = vld [vmem:[#allocation8 + $0xf8] sm:$0xff]
    %v367 = vld [vmem:[#allocation10] sm:$0xf]
    %v400 = vunpack.c.l.b16 %v335
    %v401 = vunpack.c.h.b16 %v335
    %v402 = vunpack.c.l.b16 %v336
    %v403 = vunpack.c.h.b16 %v336
    %v404 = vunpack.c.l.b16 %v337
    %v405 = vunpack.c.h.b16 %v337
    %v406 = vunpack.c.l.b16 %v338
    %v407 = vunpack.c.h.b16 %v338
    %v408 = vunpack.c.l.b16 %v339
    %v409 = vunpack.c.h.b16 %v339
    %v410 = vunpack.c.l.b16 %v340
    %v411 = vunpack.c.h.b16 %v340
    %v412 = vunpack.c.l.b16 %v341
    %v413 = vunpack.c.h.b16 %v341
    %v414 = vunpack.c.l.b16 %v342
    %v415 = vunpack.c.h.b16 %v342
    %v416 = vunpack.c.l.b16 %v343
    %v417 = vunpack.c.h.b16 %v343
    %v418 = vunpack.c.l.b16 %v344
    %v419 = vunpack.c.h.b16 %v344
    %v420 = vunpack.c.l.b16 %v345
    %v421 = vunpack.c.h.b16 %v345
    %v422 = vunpack.c.l.b16 %v346
    %v423 = vunpack.c.h.b16 %v346
    %v424 = vunpack.c.l.b16 %v347
    %v425 = vunpack.c.h.b16 %v347
    %v426 = vunpack.c.l.b16 %v348
    %v427 = vunpack.c.h.b16 %v348
    %v428 = vunpack.c.l.b16 %v349
    %v429 = vunpack.c.h.b16 %v349
    %v430 = vunpack.c.l.b16 %v350
    %v431 = vunpack.c.h.b16 %v350
    %v432 = vunpack.c.l.b16 %v351
    %v433 = vunpack.c.h.b16 %v351
    %v434 = vunpack.c.l.b16 %v352
    %v435 = vunpack.c.h.b16 %v352
    %v436 = vunpack.c.l.b16 %v353
    %v437 = vunpack.c.h.b16 %v353
    %v438 = vunpack.c.l.b16 %v354
    %v439 = vunpack.c.h.b16 %v354
    %v440 = vunpack.c.l.b16 %v355
    %v441 = vunpack.c.h.b16 %v355
    %v442 = vunpack.c.l.b16 %v356
    %v443 = vunpack.c.h.b16 %v356
    %v444 = vunpack.c.l.b16 %v357
    %v445 = vunpack.c.h.b16 %v357
    %v446 = vunpack.c.l.b16 %v358
    %v447 = vunpack.c.h.b16 %v358
    %v448 = vunpack.c.l.b16 %v359
    %v449 = vunpack.c.h.b16 %v359
    %v450 = vunpack.c.l.b16 %v360
    %v451 = vunpack.c.h.b16 %v360
    %v452 = vunpack.c.l.b16 %v361
    %v453 = vunpack.c.h.b16 %v361
    %v454 = vunpack.c.l.b16 %v362
    %v455 = vunpack.c.h.b16 %v362
    %v456 = vunpack.c.l.b16 %v363
    %v457 = vunpack.c.h.b16 %v363
    %v458 = vunpack.c.l.b16 %v364
    %v459 = vunpack.c.h.b16 %v364
    %v460 = vunpack.c.l.b16 %v365
    %v461 = vunpack.c.h.b16 %v365
    %v462 = vunpack.c.l.b16 %v366
    %v463 = vunpack.c.h.b16 %v366
    %v464 = vpack.c.b16 %v402, %v400
    %v465 = vpack.c.b16 %v403, %v401
    %v466 = vpack.c.b16 %v406, %v404
    %v467 = vpack.c.b16 %v407, %v405
    %v468 = vpack.c.b16 %v410, %v408
    %v469 = vpack.c.b16 %v411, %v409
    %v470 = vpack.c.b16 %v414, %v412
    %v471 = vpack.c.b16 %v415, %v413
    %v472 = vpack.c.b16 %v418, %v416
    %v473 = vpack.c.b16 %v419, %v417
    %v474 = vpack.c.b16 %v422, %v420
    %v475 = vpack.c.b16 %v423, %v421
    %v476 = vpack.c.b16 %v426, %v424
    %v477 = vpack.c.b16 %v427, %v425
    %v478 = vpack.c.b16 %v430, %v428
    %v479 = vpack.c.b16 %v431, %v429
    %v480 = vpack.c.b16 %v434, %v432
    %v481 = vpack.c.b16 %v435, %v433
    %v482 = vpack.c.b16 %v438, %v436
    %v483 = vpack.c.b16 %v439, %v437
    %v484 = vpack.c.b16 %v442, %v440
    %v485 = vpack.c.b16 %v443, %v441
    %v486 = vpack.c.b16 %v446, %v444
    %v487 = vpack.c.b16 %v447, %v445
    %v488 = vpack.c.b16 %v450, %v448
    %v489 = vpack.c.b16 %v451, %v449
    %v490 = vpack.c.b16 %v454, %v452
    %v491 = vpack.c.b16 %v455, %v453
    %v492 = vpack.c.b16 %v458, %v456
    %v493 = vpack.c.b16 %v459, %v457
    %v494 = vpack.c.b16 %v462, %v460
    %v495 = vpack.c.b16 %v463, %v461
    %528 = vmatpush.bf16.msra.mxu0 %v478
    %529 = vmatpush.bf16.msra.mxu0 %v476
    %530 = vmatpush.bf16.msra.mxu0 %v474
    %531 = vmatpush.bf16.msra.mxu0 %v472
    %532 = vmatpush.bf16.msra.mxu0 %v470
    %533 = vmatpush.bf16.msra.mxu0 %v468
    %534 = vmatpush.bf16.msra.mxu0 %v466
    %535 = vmatpush.bf16.msra.mxu0 %v464
    %536 = vmatmul.bf16.gmra.mxu0 %v333
    %v537 = vpop.f32.mrf.mxu0
    %v538 = vadd.f32 0.0, %v537
    %v539 = vpop.f32.mrf.mxu0
    %540 = vdwg.mxu0
    %541 = vmatpush.bf16.msra.mxu0 %v494
    %542 = vmatpush.bf16.msra.mxu0 %v492
    %543 = vmatpush.bf16.msra.mxu0 %v490
    %544 = vmatpush.bf16.msra.mxu0 %v488
    %545 = vmatpush.bf16.msra.mxu0 %v486
    %546 = vmatpush.bf16.msra.mxu0 %v484
    %547 = vmatpush.bf16.msra.mxu0 %v482
    %548 = vmatpush.bf16.msra.mxu0 %v480
    %549 = vmatmul.bf16.gmra.mxu0 %v334
    %v550 = vpop.f32.mrf.mxu0
    %v551 = vadd.f32 %v538, %v550
    %v552 = vpop.f32.mrf.mxu0
    %553 = vdwg.mxu0
    %554 = vmatpush.bf16.msra.mxu0 %v479
    %555 = vmatpush.bf16.msra.mxu0 %v477
    %556 = vmatpush.bf16.msra.mxu0 %v475
    %557 = vmatpush.bf16.msra.mxu0 %v473
    %558 = vmatpush.bf16.msra.mxu0 %v471
    %559 = vmatpush.bf16.msra.mxu0 %v469
    %560 = vmatpush.bf16.msra.mxu0 %v467
    %561 = vmatpush.bf16.msra.mxu0 %v465
    %562 = vmatmul.bf16.gmra.mxu0 %v333
    %v563 = vpop.f32.mrf.mxu0
    %v564 = vadd.f32 0.0, %v563
    %v565 = vpop.f32.mrf.mxu0
    %566 = vdwg.mxu0
    %567 = vmatpush.bf16.msra.mxu0 %v495
    %568 = vmatpush.bf16.msra.mxu0 %v493
    %569 = vmatpush.bf16.msra.mxu0 %v491
    %570 = vmatpush.bf16.msra.mxu0 %v489
    %571 = vmatpush.bf16.msra.mxu0 %v487
    %572 = vmatpush.bf16.msra.mxu0 %v485
    %573 = vmatpush.bf16.msra.mxu0 %v483
    %574 = vmatpush.bf16.msra.mxu0 %v481
    %575 = vmatmul.bf16.gmra.mxu0 %v334
    %v576 = vpop.f32.mrf.mxu0
    %v577 = vadd.f32 %v564, %v576
    %v578 = vpop.f32.mrf.mxu0
    %579 = vdwg.mxu0
    %v580 = vrot.slane %v551, 4
    %v581 = vadd.f32 %v551, %v580
    %v582 = vrot.slane %v581, 2
    %v583 = vadd.f32 %v581, %v582
    %v584 = vrot.slane %v583, 1
    %v585 = vadd.f32 %v583, %v584
    %v586 = vrot.slane %v577, 4
    %v587 = vadd.f32 %v577, %v586
    %v588 = vrot.slane %v587, 2
    %v589 = vadd.f32 %v587, %v588
    %v590 = vrot.slane %v589, 1
    %v591 = vadd.f32 %v589, %v590
    %v592 = vmul.f32 %v585, 0.125
    %v593 = vmul.f32 %v591, 0.125
    %v594 = vmul.f32 %v551, %v551
    %v595 = vmul.f32 %v577, %v577
    %v596 = vrot.slane %v594, 4
    %v597 = vadd.f32 %v594, %v596
    %v598 = vrot.slane %v597, 2
    %v599 = vadd.f32 %v597, %v598
    %v600 = vrot.slane %v599, 1
    %v601 = vadd.f32 %v599, %v600
    %v602 = vrot.slane %v595, 4
    %v603 = vadd.f32 %v595, %v602
    %v604 = vrot.slane %v603, 2
    %v605 = vadd.f32 %v603, %v604
    %v606 = vrot.slane %v605, 1
    %v607 = vadd.f32 %v605, %v606
    %v608 = vmul.f32 %v601, 0.125
    %v609 = vmul.f32 %v607, 0.125
    %v610 = vmul.f32 %v592, %v592
    %v611 = vmul.f32 %v593, %v593
    %v612 = vsub.f32 %v608, %v610
    %v613 = vsub.f32 %v609, %v611
    %v614 = vmax.f32 %v612, 0.0
    %v615 = vmax.f32 %v613, 0.0
    %v616 = vadd.f32 %v614, 1e-05
    %v617 = vadd.f32 %v615, 1e-05
    %v618 = vrsqrt.pop %v616
    %v619 = vmul.f32 %v618, %v616
    %v620 = vmul.f32 %v619, %v618
    %v621 = vmul.f32 0.5, %v620
    %v622 = vsub.f32 1.5, %v621
    %v623 = vmul.f32 %v618, %v622
    %vm624 = vweird.f32 %v616
    %vm625 = vweird.f32 %v618
    %vm626 = vmor %vm624, %vm625
    %v627 = vsel %vm626, %v618, %v623
    %v628 = vrsqrt.pop %v617
    %v629 = vmul.f32 %v628, %v617
    %v630 = vmul.f32 %v629, %v628
    %v631 = vmul.f32 0.5, %v630
    %v632 = vsub.f32 1.5, %v631
    %v633 = vmul.f32 %v628, %v632
    %vm634 = vweird.f32 %v617
    %vm635 = vweird.f32 %v628
    %vm636 = vmor %vm634, %vm635
    %v637 = vsel %vm636, %v628, %v633
    %v640 = vrot.slane %v637, 6
    %v641 = vsel %vm300, %v627, %v640
    %v643 = vmul.f32 %v367, %v641
    %v645 = vperm.slane %v643, 0
    %v646 = vperm.slane %v643, 2
    %v649 = vmul.f32 %v592, %v645
    %v650 = vmul.f32 %v593, %v646
    %v653 = vrot.slane %v650, 6
    %v654 = vsel %vm300, %v649, %v653
    %v655 = vrot.slane %v654, 7
    %v657 = vsub.f32 %v367, %v655
    %v658 = vperm.slane %v645, 0
    %v659 = vperm.slane %v646, 0
    %v660 = vmul.f32 %v551, %v658
    %v661 = vmul.f32 %v577, %v659
    %v663 = vperm.slane %v657, 1
    %v664 = vperm.slane %v657, 3
    %v667 = vperm.slane %v663, 1
    %v668 = vperm.slane %v664, 1
    %v669 = vadd.f32 %v660, %v667
    %v670 = vadd.f32 %v661, %v668
    %v671 = vmax.f32 %v669, 0.0
    %v672 = vmax.f32 %v670, 0.0
    %v673 = vpack.c.bf16 %v671, %v671
    %v674 = vpack.c.bf16 %v672, %v672
    %v675 = vld [vmem:[#allocation11] sm:$0xff]
    %v676 = vld [vmem:[#allocation11 + $0x8] sm:$0xff]
    %v677 = vld [vmem:[#allocation11 + $0x10] sm:$0xff]
    %v678 = vld [vmem:[#allocation11 + $0x18] sm:$0xff]
    %v679 = vld [vmem:[#allocation11 + $0x20] sm:$0xff]
    %v680 = vld [vmem:[#allocation11 + $0x28] sm:$0xff]
    %v681 = vld [vmem:[#allocation11 + $0x30] sm:$0xff]
    %v682 = vld [vmem:[#allocation11 + $0x38] sm:$0xff]
    %v683 = vld [vmem:[#allocation11 + $0x40] sm:$0xff]
    %v684 = vld [vmem:[#allocation11 + $0x48] sm:$0xff]
    %v685 = vld [vmem:[#allocation11 + $0x50] sm:$0xff]
    %v686 = vld [vmem:[#allocation11 + $0x58] sm:$0xff]
    %v687 = vld [vmem:[#allocation11 + $0x60] sm:$0xff]
    %v688 = vld [vmem:[#allocation11 + $0x68] sm:$0xff]
    %v689 = vld [vmem:[#allocation11 + $0x70] sm:$0xff]
    %v690 = vld [vmem:[#allocation11 + $0x78] sm:$0xff]
    %v691 = vld [vmem:[#allocation11 + $0x80] sm:$0xff]
    %v692 = vld [vmem:[#allocation11 + $0x88] sm:$0xff]
    %v693 = vld [vmem:[#allocation11 + $0x90] sm:$0xff]
    %v694 = vld [vmem:[#allocation11 + $0x98] sm:$0xff]
    %v695 = vld [vmem:[#allocation11 + $0xa0] sm:$0xff]
    %v696 = vld [vmem:[#allocation11 + $0xa8] sm:$0xff]
    %v697 = vld [vmem:[#allocation11 + $0xb0] sm:$0xff]
    %v698 = vld [vmem:[#allocation11 + $0xb8] sm:$0xff]
    %v699 = vld [vmem:[#allocation11 + $0xc0] sm:$0xff]
    %v700 = vld [vmem:[#allocation11 + $0xc8] sm:$0xff]
    %v701 = vld [vmem:[#allocation11 + $0xd0] sm:$0xff]
    %v702 = vld [vmem:[#allocation11 + $0xd8] sm:$0xff]
    %v703 = vld [vmem:[#allocation11 + $0xe0] sm:$0xff]
    %v704 = vld [vmem:[#allocation11 + $0xe8] sm:$0xff]
    %v705 = vld [vmem:[#allocation11 + $0xf0] sm:$0xff]
    %v706 = vld [vmem:[#allocation11 + $0xf8] sm:$0xff]
    %v707 = vld [vmem:[%s6] sm:$0xf]
    %v740 = vunpack.c.l.b16 %v675
    %v741 = vunpack.c.h.b16 %v675
    %v742 = vunpack.c.l.b16 %v676
    %v743 = vunpack.c.h.b16 %v676
    %v744 = vunpack.c.l.b16 %v677
    %v745 = vunpack.c.h.b16 %v677
    %v746 = vunpack.c.l.b16 %v678
    %v747 = vunpack.c.h.b16 %v678
    %v748 = vunpack.c.l.b16 %v679
    %v749 = vunpack.c.h.b16 %v679
    %v750 = vunpack.c.l.b16 %v680
    %v751 = vunpack.c.h.b16 %v680
    %v752 = vunpack.c.l.b16 %v681
    %v753 = vunpack.c.h.b16 %v681
    %v754 = vunpack.c.l.b16 %v682
    %v755 = vunpack.c.h.b16 %v682
    %v756 = vunpack.c.l.b16 %v683
    %v757 = vunpack.c.h.b16 %v683
    %v758 = vunpack.c.l.b16 %v684
    %v759 = vunpack.c.h.b16 %v684
    %v760 = vunpack.c.l.b16 %v685
    %v761 = vunpack.c.h.b16 %v685
    %v762 = vunpack.c.l.b16 %v686
    %v763 = vunpack.c.h.b16 %v686
    %v764 = vunpack.c.l.b16 %v687
    %v765 = vunpack.c.h.b16 %v687
    %v766 = vunpack.c.l.b16 %v688
    %v767 = vunpack.c.h.b16 %v688
    %v768 = vunpack.c.l.b16 %v689
    %v769 = vunpack.c.h.b16 %v689
    %v770 = vunpack.c.l.b16 %v690
    %v771 = vunpack.c.h.b16 %v690
    %v772 = vunpack.c.l.b16 %v691
    %v773 = vunpack.c.h.b16 %v691
    %v774 = vunpack.c.l.b16 %v692
    %v775 = vunpack.c.h.b16 %v692
    %v776 = vunpack.c.l.b16 %v693
    %v777 = vunpack.c.h.b16 %v693
    %v778 = vunpack.c.l.b16 %v694
    %v779 = vunpack.c.h.b16 %v694
    %v780 = vunpack.c.l.b16 %v695
    %v781 = vunpack.c.h.b16 %v695
    %v782 = vunpack.c.l.b16 %v696
    %v783 = vunpack.c.h.b16 %v696
    %v784 = vunpack.c.l.b16 %v697
    %v785 = vunpack.c.h.b16 %v697
    %v786 = vunpack.c.l.b16 %v698
    %v787 = vunpack.c.h.b16 %v698
    %v788 = vunpack.c.l.b16 %v699
    %v789 = vunpack.c.h.b16 %v699
    %v790 = vunpack.c.l.b16 %v700
    %v791 = vunpack.c.h.b16 %v700
    %v792 = vunpack.c.l.b16 %v701
    %v793 = vunpack.c.h.b16 %v701
    %v794 = vunpack.c.l.b16 %v702
    %v795 = vunpack.c.h.b16 %v702
    %v796 = vunpack.c.l.b16 %v703
    %v797 = vunpack.c.h.b16 %v703
    %v798 = vunpack.c.l.b16 %v704
    %v799 = vunpack.c.h.b16 %v704
    %v800 = vunpack.c.l.b16 %v705
    %v801 = vunpack.c.h.b16 %v705
    %v802 = vunpack.c.l.b16 %v706
    %v803 = vunpack.c.h.b16 %v706
    %v804 = vpack.c.b16 %v742, %v740
    %v805 = vpack.c.b16 %v743, %v741
    %v806 = vpack.c.b16 %v746, %v744
    %v807 = vpack.c.b16 %v747, %v745
    %v808 = vpack.c.b16 %v750, %v748
    %v809 = vpack.c.b16 %v751, %v749
    %v810 = vpack.c.b16 %v754, %v752
    %v811 = vpack.c.b16 %v755, %v753
    %v812 = vpack.c.b16 %v758, %v756
    %v813 = vpack.c.b16 %v759, %v757
    %v814 = vpack.c.b16 %v762, %v760
    %v815 = vpack.c.b16 %v763, %v761
    %v816 = vpack.c.b16 %v766, %v764
    %v817 = vpack.c.b16 %v767, %v765
    %v818 = vpack.c.b16 %v770, %v768
    %v819 = vpack.c.b16 %v771, %v769
    %v820 = vpack.c.b16 %v774, %v772
    %v821 = vpack.c.b16 %v775, %v773
    %v822 = vpack.c.b16 %v778, %v776
    %v823 = vpack.c.b16 %v779, %v777
    %v824 = vpack.c.b16 %v782, %v780
    %v825 = vpack.c.b16 %v783, %v781
    %v826 = vpack.c.b16 %v786, %v784
    %v827 = vpack.c.b16 %v787, %v785
    %v828 = vpack.c.b16 %v790, %v788
    %v829 = vpack.c.b16 %v791, %v789
    %v830 = vpack.c.b16 %v794, %v792
    %v831 = vpack.c.b16 %v795, %v793
    %v832 = vpack.c.b16 %v798, %v796
    %v833 = vpack.c.b16 %v799, %v797
    %v834 = vpack.c.b16 %v802, %v800
    %v835 = vpack.c.b16 %v803, %v801
    %868 = vmatpush.bf16.msra.mxu0 %v818
    %869 = vmatpush.bf16.msra.mxu0 %v816
    %870 = vmatpush.bf16.msra.mxu0 %v814
    %871 = vmatpush.bf16.msra.mxu0 %v812
    %872 = vmatpush.bf16.msra.mxu0 %v810
    %873 = vmatpush.bf16.msra.mxu0 %v808
    %874 = vmatpush.bf16.msra.mxu0 %v806
    %875 = vmatpush.bf16.msra.mxu0 %v804
    %876 = vmatmul.bf16.gmra.mxu0 %v673
    %v877 = vpop.f32.mrf.mxu0
    %v878 = vadd.f32 0.0, %v877
    %v879 = vpop.f32.mrf.mxu0
    %880 = vdwg.mxu0
    %881 = vmatpush.bf16.msra.mxu0 %v834
    %882 = vmatpush.bf16.msra.mxu0 %v832
    %883 = vmatpush.bf16.msra.mxu0 %v830
    %884 = vmatpush.bf16.msra.mxu0 %v828
    %885 = vmatpush.bf16.msra.mxu0 %v826
    %886 = vmatpush.bf16.msra.mxu0 %v824
    %887 = vmatpush.bf16.msra.mxu0 %v822
    %888 = vmatpush.bf16.msra.mxu0 %v820
    %889 = vmatmul.bf16.gmra.mxu0 %v674
    %v890 = vpop.f32.mrf.mxu0
    %v891 = vadd.f32 %v878, %v890
    %v892 = vpop.f32.mrf.mxu0
    %893 = vdwg.mxu0
    %894 = vmatpush.bf16.msra.mxu0 %v819
    %895 = vmatpush.bf16.msra.mxu0 %v817
    %896 = vmatpush.bf16.msra.mxu0 %v815
    %897 = vmatpush.bf16.msra.mxu0 %v813
    %898 = vmatpush.bf16.msra.mxu0 %v811
    %899 = vmatpush.bf16.msra.mxu0 %v809
    %900 = vmatpush.bf16.msra.mxu0 %v807
    %901 = vmatpush.bf16.msra.mxu0 %v805
    %902 = vmatmul.bf16.gmra.mxu0 %v673
    %v903 = vpop.f32.mrf.mxu0
    %v904 = vadd.f32 0.0, %v903
    %v905 = vpop.f32.mrf.mxu0
    %906 = vdwg.mxu0
    %907 = vmatpush.bf16.msra.mxu0 %v835
    %908 = vmatpush.bf16.msra.mxu0 %v833
    %909 = vmatpush.bf16.msra.mxu0 %v831
    %910 = vmatpush.bf16.msra.mxu0 %v829
    %911 = vmatpush.bf16.msra.mxu0 %v827
    %912 = vmatpush.bf16.msra.mxu0 %v825
    %913 = vmatpush.bf16.msra.mxu0 %v823
    %914 = vmatpush.bf16.msra.mxu0 %v821
    %915 = vmatmul.bf16.gmra.mxu0 %v674
    %v916 = vpop.f32.mrf.mxu0
    %v917 = vadd.f32 %v904, %v916
    %v918 = vpop.f32.mrf.mxu0
    %919 = vdwg.mxu0
    %v920 = vrot.slane %v891, 4
    %v921 = vadd.f32 %v891, %v920
    %v922 = vrot.slane %v921, 2
    %v923 = vadd.f32 %v921, %v922
    %v924 = vrot.slane %v923, 1
    %v925 = vadd.f32 %v923, %v924
    %v926 = vrot.slane %v917, 4
    %v927 = vadd.f32 %v917, %v926
    %v928 = vrot.slane %v927, 2
    %v929 = vadd.f32 %v927, %v928
    %v930 = vrot.slane %v929, 1
    %v931 = vadd.f32 %v929, %v930
    %v932 = vmul.f32 %v925, 0.125
    %v933 = vmul.f32 %v931, 0.125
    %v934 = vmul.f32 %v891, %v891
    %v935 = vmul.f32 %v917, %v917
    %v936 = vrot.slane %v934, 4
    %v937 = vadd.f32 %v934, %v936
    %v938 = vrot.slane %v937, 2
    %v939 = vadd.f32 %v937, %v938
    %v940 = vrot.slane %v939, 1
    %v941 = vadd.f32 %v939, %v940
    %v942 = vrot.slane %v935, 4
    %v943 = vadd.f32 %v935, %v942
    %v944 = vrot.slane %v943, 2
    %v945 = vadd.f32 %v943, %v944
    %v946 = vrot.slane %v945, 1
    %v947 = vadd.f32 %v945, %v946
    %v948 = vmul.f32 %v941, 0.125
    %v949 = vmul.f32 %v947, 0.125
    %v950 = vmul.f32 %v932, %v932
    %v951 = vmul.f32 %v933, %v933
    %v952 = vsub.f32 %v948, %v950
    %v953 = vsub.f32 %v949, %v951
    %v954 = vmax.f32 %v952, 0.0
    %v955 = vmax.f32 %v953, 0.0
    %v956 = vadd.f32 %v954, 1e-05
    %v957 = vadd.f32 %v955, 1e-05
    %v958 = vrsqrt.pop %v956
    %v959 = vmul.f32 %v958, %v956
    %v960 = vmul.f32 %v959, %v958
    %v961 = vmul.f32 0.5, %v960
    %v962 = vsub.f32 1.5, %v961
    %v963 = vmul.f32 %v958, %v962
    %vm964 = vweird.f32 %v956
    %vm965 = vweird.f32 %v958
    %vm966 = vmor %vm964, %vm965
    %v967 = vsel %vm966, %v958, %v963
    %v968 = vrsqrt.pop %v957
    %v969 = vmul.f32 %v968, %v957
    %v970 = vmul.f32 %v969, %v968
    %v971 = vmul.f32 0.5, %v970
    %v972 = vsub.f32 1.5, %v971
    %v973 = vmul.f32 %v968, %v972
    %vm974 = vweird.f32 %v957
    %vm975 = vweird.f32 %v968
    %vm976 = vmor %vm974, %vm975
    %v977 = vsel %vm976, %v968, %v973
    %v980 = vrot.slane %v977, 6
    %v981 = vsel %vm300, %v967, %v980
    %v983 = vmul.f32 %v707, %v981
    %v985 = vperm.slane %v983, 0
    %v986 = vperm.slane %v983, 2
    %v989 = vmul.f32 %v932, %v985
    %v990 = vmul.f32 %v933, %v986
    %v993 = vrot.slane %v990, 6
    %v994 = vsel %vm300, %v989, %v993
    %v995 = vrot.slane %v994, 7
    %v997 = vsub.f32 %v707, %v995
    %v998 = vperm.slane %v985, 0
    %v999 = vperm.slane %v986, 0
    %v1000 = vmul.f32 %v891, %v998
    %v1001 = vmul.f32 %v917, %v999
    %v1003 = vperm.slane %v997, 1
    %v1004 = vperm.slane %v997, 3
    %v1007 = vperm.slane %v1003, 1
    %v1008 = vperm.slane %v1004, 1
    %v1009 = vadd.f32 %v1000, %v1007
    %v1010 = vadd.f32 %v1001, %v1008
    %1011 = vst [vmem:[#allocation13] sm:$0xff] %v1009
    %1012 = vst [vmem:[#allocation13 + $0x8] sm:$0xff] %v1010
    // Predicated region
    $region54: #{tpu_custom_call.1} parent=1 // pred_check
      _
    $region55: #{tpu_custom_call.1} parent=1 // pred_check_branch
      %1014 = sbr.rel (0) target = $region57
    $region56: #{tpu_custom_call.1} parent=1 // pred_region
      %1016 = vsyncadd [#allocation4], 0
      %s1018 = sshll.u32 [#allocation13], 4
      %s1019 = int_to_ptr.vmem [resolvable:$true] %s1018
      %s1020 = sshll.u32 %s7, 4
      %s1021 = int_to_ptr.hbm [resolvable:$true] %s1020
      %1023 = dma.vmem_to_hbm [thread:$0]  %s1019, 256, %s1021, [#allocation4]
    $region57: #{tpu_custom_call.1} parent=1 // pred_fallthru
      _
    // Predicated region
    $region58: #{tpu_custom_call.1} parent=1 // pred_check
      _
    $region59: #{tpu_custom_call.1} parent=1 // pred_check_branch
      %1025 = sbr.rel (0) target = $region61
    $region60: #{tpu_custom_call.1} parent=1 // pred_region
      %1027 = dma.done [#allocation4], 256
    $region61: #{tpu_custom_call.1} parent=1 // pred_fallthru
      _
    %1028 = vsyncpa [#allocation3], 1
    %1029 = vsyncpa [#allocation6], 1
    %1030 = vsyncpa [#allocation9], 1
    %1031 = vsyncpa [#allocation12], 1
    %1032 = vsyncpa [#allocation4], 1

</llo_original>
